<compile_context>
chip_gen: v7x
topology: tpu7x:2x2x1
jax: 0.10.0
libtpu: 0.0.40
codegen_flags: <defaults>
</compile_context>

<pallas_src>
import functools

import jax
import jax.numpy as jnp
from jax import lax
from jax.experimental import pallas as pl
from jax.experimental.pallas import tpu as pltpu

_QWK_LOSS_EPSILON = 1e-09


def _round_up(x: int, m: int) -> int:
    return (x + m - 1) // m * m


def _cdiv(a: int, b: int) -> int:
    return (a + b - 1) // b


def _qwk_partial_kernel(logits_ref, target_ref, out_ref, num_acc, sp_acc, cls_ref,
                        *, n_total: int, tiles_per_split: int):
    """One (split s, batch-tile t) grid step.

    logits_ref: (C, TN) native dtype, batch on the 128-wide lane axis.
    target_ref: (1, TN) int32.
    out_ref   : (1, 2C, 128) f32 per-split partials:
                rows [0, C)  = per-class numerator partial,
                rows [C, 2C) = per-class probability-mass partial.
    num_acc / sp_acc: (C, 1) f32 persistent VMEM accumulators.
    cls_ref   : (C, TN) f32 hoisted class-index iota.
    """
    C, tn = logits_ref.shape
    s = pl.program_id(0)
    t = pl.program_id(1)

    @pl.when(t == 0)
    def _init():
        num_acc[...] = jnp.zeros_like(num_acc)
        sp_acc[...] = jnp.zeros_like(sp_acc)
        cls_ref[...] = lax.broadcasted_iota(jnp.int32, (C, tn), 0).astype(jnp.float32)

    # Ragged-edge / over-provisioned-split mask from the *global* column index
    # (the wrapper no longer pads; OOB lanes may contain arbitrary garbage).
    tile_idx = s * tiles_per_split + t               # unclamped on purpose
    col = tile_idx * tn + lax.broadcasted_iota(jnp.int32, (1, tn), 1)
    valid = col < n_total                            # (1, TN) bool
    valid_f = valid.astype(jnp.float32)

    # Softmax over classes (the short sublane axis).  Mask BEFORE the exp so
    # garbage (even inf/NaN) in invalid lanes cannot poison the reductions.
    x = jnp.where(valid, logits_ref[...].astype(jnp.float32), 0.0)   # (C, TN)
    m = jnp.max(x, axis=0, keepdims=True)            # (1, TN)
    e = jnp.exp(x - m)                               # (C, TN)
    rowsum = jnp.sum(e, axis=0, keepdims=True)       # (1, TN), >= 1 everywhere
    scale = valid_f / rowsum                         # exact divide (not binding)
    probs = e * scale                                # zero on invalid lanes

    # Gather-by-formula cost rows: cost[target_n, c] = (target_n - c)^2.
    tgt_f = target_ref[...].astype(jnp.float32)      # (1, TN)
    diff = tgt_f - cls_ref[...]                      # (C, TN)
    costs = diff * diff

    # Per-tile lane reductions (XLU) into tiny (C, 1) accumulators - no big
    # (C, TN) read-modify-write accumulator streams.
    num_acc[...] += jnp.sum(costs * probs, axis=1, keepdims=True)
    sp_acc[...] += jnp.sum(probs, axis=1, keepdims=True)

    @pl.when(t == pl.num_programs(1) - 1)
    def _finalize():
        lanes = out_ref.shape[-1]
        out_ref[0, 0:C, :] = jnp.broadcast_to(num_acc[...], (C, lanes))
        out_ref[0, C:, :] = jnp.broadcast_to(sp_acc[...], (C, lanes))


def qwk_loss(logits: jnp.ndarray, target: jnp.ndarray, num_classes: int,
             *, tile_n: int | None = None) -> jnp.ndarray:
    n, c = logits.shape
    assert c == num_classes
    target = target.astype(jnp.int32)

    # Lane-dense layout: batch on lanes, classes on sublanes.  Streamed in the
    # *native* dtype (bf16 halves logits HBM traffic; upcast happens in-kernel).
    # TODO(synk): accept producer-side (C, N) layout (or use
    # CompilerParams(allow_input_fusion=...)) to also fold this transpose into
    # the pallas_call input and save one extra HBM round trip of the logits.
    logits_t = jnp.transpose(logits)                  # (C, N)
    target_2d = target[None, :]                       # (1, N)
    esz = jnp.dtype(logits.dtype).itemsize

    # --- Per-generation VMEM budget -> batch-tile size ----------------------
    try:
        phys_vmem = pltpu.get_tpu_info().vmem_capacity_bytes
    except Exception:  # pragma: no cover - conservative fallback
        phys_vmem = 128 << 20
    budget = min(phys_vmem // 2, 48 << 20)            # 48 MiB v5e/v6e, 32 MiB v7x
    # bytes per streamed column: double-buffered logits + target + f32 iota scratch
    per_col = 2 * (c * esz + 4) + 4 * c
    cols_cap = max(128, ((budget - (2 << 20)) // per_col) // 128 * 128)
    if tile_n is None:
        tile_n = 128 * 1024                           # amortize ~0.35us/grid-step
    if n <= 128:
        tn = n                                        # single block == full dim (legal)
    else:
        tn = max(128, min(_round_up(tile_n, 128), cols_cap, (n // 128) * 128))

    n_tiles = _cdiv(n, tn)
    # Leading "parallel" axis: v7x shards the batch across its 2 TensorCores;
    # single-TC chips simply iterate it (negligible cost).
    num_splits = 2 if n_tiles >= 2 else 1
    tiles_per_split = _cdiv(n_tiles, num_splits)
    max_tile = n_tiles - 1

    def _tile_index(sidx, tidx):
        # Clamp so over-provisioned (fully masked) steps never DMA out of range;
        # their contribution is zeroed by the in-kernel global-column mask.
        return jnp.minimum(sidx * tiles_per_split + tidx, max_tile)

    kernel = functools.partial(_qwk_partial_kernel, n_total=n,
                               tiles_per_split=tiles_per_split)
    vmem_limit = int(min(phys_vmem, per_col * tn + (8 << 20)))

    partials = pl.pallas_call(
        kernel,
        out_shape=jax.ShapeDtypeStruct((num_splits, 2 * c, 128), jnp.float32),
        grid_spec=pltpu.PrefetchScalarGridSpec(
            num_scalar_prefetch=0,
            grid=(num_splits, tiles_per_split),
            in_specs=[
                pl.BlockSpec((c, tn), lambda s, t: (0, _tile_index(s, t))),
                pl.BlockSpec((1, tn), lambda s, t: (0, _tile_index(s, t))),
            ],
            out_specs=pl.BlockSpec((1, 2 * c, 128), lambda s, t: (s, 0, 0)),
            scratch_shapes=[
                pltpu.VMEM((c, 1), jnp.float32),      # per-class numerator acc
                pltpu.VMEM((c, 1), jnp.float32),      # per-class prob-mass acc
                pltpu.VMEM((c, tn), jnp.float32),     # hoisted class iota
            ],
        ),
        compiler_params=pltpu.CompilerParams(
            dimension_semantics=("parallel", "arbitrary"),
            vmem_limit_bytes=vmem_limit,
        ),
        cost_estimate=pl.CostEstimate(
            flops=int(12 * n * c),
            transcendentals=int(n * c),
            bytes_accessed=int(n * (c * esz + 4) + num_splits * 2 * c * 128 * 4),
        ),
    )(logits_t, target_2d)

    # --- Tiny C-sized finalize in the wrapper --------------------------------
    numerator = jnp.sum(partials[:, :c, 0])                       # scalar
    sum_prob = jnp.sum(partials[:, c:, 0], axis=0)                # (C,)
    counts = jnp.sum((target[:, None] == jnp.arange(c)[None, :]).astype(jnp.float32),
                     axis=0)                                      # (C,), exact
    idx = jnp.arange(c, dtype=jnp.float32)
    cost = (idx[:, None] - idx[None, :]) ** 2                     # (C, C)
    denominator = jnp.sum(jnp.sum(cost * sum_prob[None, :], axis=1)
                          * (counts / counts.sum())) + _QWK_LOSS_EPSILON
    # TODO(synk): for C <= 4, pack 8//C batch groups into the sublane axis and
    # use segmented sublane reductions to fill every f32 vreg (only worthwhile
    # if measured VALU/vst-bound after the tiling/accumulator fixes).
    return jnp.log(numerator / denominator)


def qwk_loss_ref(logits, target, num_classes):
    """Pure-JAX reference matching the PyTorch forward exactly."""
    probs = jax.nn.softmax(logits.astype(jnp.float32), axis=1)
    idx = jnp.arange(num_classes, dtype=jnp.float32)
    cost = (idx[:, None] - idx[None, :]) ** 2
    costs = cost[target]
    numerator = jnp.sum(costs * probs)
    sum_prob = jnp.sum(probs, axis=0)
    oh = jax.nn.one_hot(target, num_classes, dtype=jnp.float32)
    n = jnp.sum(oh, axis=0)
    denominator = jnp.sum(jnp.sum(cost * sum_prob[None, :], axis=1) * (n / n.sum()))
    denominator = denominator + _QWK_LOSS_EPSILON
    return jnp.log(numerator / denominator)


if __name__ == "__main__":
    key = jax.random.PRNGKey(0)
    N, C = 8, 4   # small shapes: batch=8, num_classes=4
    k1, k2 = jax.random.split(key)
    logits = jax.random.normal(k1, (N, C), dtype=jnp.float32)
    target = jax.random.randint(k2, (N,), 0, C, dtype=jnp.int32)

    loss = qwk_loss(logits, target, C)
    jax.block_until_ready(loss)

    ref = qwk_loss_ref(logits, target, C)
    assert jnp.allclose(loss, ref, atol=1e-4, rtol=1e-4), (loss, ref)
    print("KERNEL_OK")
</pallas_src>

<mosaic_0001>
module attributes {stable_mosaic.version = 11 : i64} {
  func.func @_qwk_partial_kernel(%arg0: i32, %arg1: i32, %arg2: memref<4x8xf32, #tpu.memory_space<vmem>>, %arg3: memref<1x8xi32, #tpu.memory_space<vmem>>, %arg4: memref<1x8x128xf32, #tpu.memory_space<vmem>>, %arg5: memref<4x1xf32, #tpu.memory_space<vmem>>, %arg6: memref<4x1xf32, #tpu.memory_space<vmem>>, %arg7: memref<4x8xf32, #tpu.memory_space<vmem>>) attributes {dimension_semantics = [#tpu.dimension_semantics<parallel>, #tpu.dimension_semantics<arbitrary>], iteration_bounds = array<i64: 1, 1>, scalar_prefetch = 0 : i64, scratch_operands = 3 : i64, tpu.core_type = #tpu.core_type<tc>, window_params = [{transform_indices = @transform_0, window_bounds = array<i64: 4, 8>}, {transform_indices = @transform_1, window_bounds = array<i64: 1, 8>}, {transform_indices = @transform_2, window_bounds = array<i64: 1, 8, 128>}]} {
    %c0_i32 = arith.constant 0 : i32
    %0 = arith.cmpi eq, %arg1, %c0_i32 : i32
    %1 = arith.extui %0 : i1 to i32
    %c0_i32_0 = arith.constant 0 : i32
    %2 = arith.cmpi ne, %1, %c0_i32_0 : i32
    scf.if %2 {
      %cst_21 = arith.constant 0.000000e+00 : f32
      %48 = vector.broadcast %cst_21 : f32 to vector<4x1xf32>
      %c0_22 = arith.constant 0 : index
      %c0_23 = arith.constant 0 : index
      %49 = vector.load %arg5[%c0_22, %c0_23] : memref<4x1xf32, #tpu.memory_space<vmem>>, vector<4x1xf32>
      tpu.vector_store %arg5[%c0_22, %c0_23], %48 {strides = array<i32>} : memref<4x1xf32, #tpu.memory_space<vmem>>, vector<4x1xf32>,
      %cst_24 = arith.constant 0.000000e+00 : f32
      %50 = vector.broadcast %cst_24 : f32 to vector<4x1xf32>
      %c0_25 = arith.constant 0 : index
      %c0_26 = arith.constant 0 : index
      %51 = vector.load %arg6[%c0_25, %c0_26] : memref<4x1xf32, #tpu.memory_space<vmem>>, vector<4x1xf32>
      tpu.vector_store %arg6[%c0_25, %c0_26], %50 {strides = array<i32>} : memref<4x1xf32, #tpu.memory_space<vmem>>, vector<4x1xf32>,
      %52 = tpu.iota {dimensions = array<i32: 0>} : vector<4x8xi32>
      %53 = arith.sitofp %52 : vector<4x8xi32> to vector<4x8xf32>
      %c0_27 = arith.constant 0 : index
      %c0_28 = arith.constant 0 : index
      %54 = vector.load %arg7[%c0_27, %c0_28] : memref<4x8xf32, #tpu.memory_space<vmem>>, vector<4x8xf32>
      tpu.vector_store %arg7[%c0_27, %c0_28], %53 {strides = array<i32>} : memref<4x8xf32, #tpu.memory_space<vmem>>, vector<4x8xf32>,
    } else {
    }
    %c1_i32 = arith.constant 1 : i32
    %3 = arith.muli %arg0, %c1_i32 : i32
    %4 = arith.addi %3, %arg1 : i32
    %c8_i32 = arith.constant 8 : i32
    %5 = arith.muli %4, %c8_i32 : i32
    %6 = tpu.iota {dimensions = array<i32: 1>} : vector<1x8xi32>
    %7 = vector.broadcast %5 : i32 to vector<1x8xi32>
    %8 = arith.addi %7, %6 : vector<1x8xi32>
    %c8_i32_1 = arith.constant 8 : i32
    %9 = vector.broadcast %c8_i32_1 : i32 to vector<1x8xi32>
    %10 = arith.cmpi slt, %8, %9 : vector<1x8xi32>
    %11 = arith.extui %10 : vector<1x8xi1> to vector<1x8xi32>
    %12 = arith.sitofp %11 : vector<1x8xi32> to vector<1x8xf32>
    %c0 = arith.constant 0 : index
    %c0_2 = arith.constant 0 : index
    %13 = vector.load %arg2[%c0, %c0_2] : memref<4x8xf32, #tpu.memory_space<vmem>>, vector<4x8xf32>
    %cst = arith.constant 0.000000e+00 : f32
    %14 = vector.shape_cast %10 : vector<1x8xi1> to vector<1x8xi1>
    %15 = vector.broadcast %14 : vector<1x8xi1> to vector<4x8xi1>
    %16 = vector.broadcast %cst : f32 to vector<4x8xf32>
    %17 = arith.select %15, %13, %16 : vector<4x8xi1>, vector<4x8xf32>
    %cst_3 = arith.constant dense<0xFF800000> : vector<8xf32>
    %18 = vector.multi_reduction <maximumf>, %17, %cst_3 [0] : vector<4x8xf32> to vector<8xf32>
    %19 = vector.shape_cast %18 : vector<8xf32> to vector<1x8xf32>
    %20 = vector.broadcast %19 : vector<1x8xf32> to vector<4x8xf32>
    %21 = arith.subf %17, %20 : vector<4x8xf32>
    %22 = math.exp %21 : vector<4x8xf32>
    %cst_4 = arith.constant dense<0.000000e+00> : vector<8xf32>
    %23 = vector.multi_reduction <add>, %22, %cst_4 [0] : vector<4x8xf32> to vector<8xf32>
    %24 = vector.shape_cast %23 : vector<8xf32> to vector<1x8xf32>
    %25 = arith.divf %12, %24 : vector<1x8xf32>
    %26 = vector.broadcast %25 : vector<1x8xf32> to vector<4x8xf32>
    %27 = arith.mulf %22, %26 : vector<4x8xf32>
    %c0_5 = arith.constant 0 : index
    %c0_6 = arith.constant 0 : index
    %28 = vector.load %arg3[%c0_5, %c0_6] : memref<1x8xi32, #tpu.memory_space<vmem>>, vector<1x8xi32>
    %29 = arith.sitofp %28 : vector<1x8xi32> to vector<1x8xf32>
    %c0_7 = arith.constant 0 : index
    %c0_8 = arith.constant 0 : index
    %30 = vector.load %arg7[%c0_7, %c0_8] : memref<4x8xf32, #tpu.memory_space<vmem>>, vector<4x8xf32>
    %31 = vector.broadcast %29 : vector<1x8xf32> to vector<4x8xf32>
    %32 = arith.subf %31, %30 : vector<4x8xf32>
    %33 = arith.mulf %32, %32 : vector<4x8xf32>
    %c0_9 = arith.constant 0 : index
    %c0_10 = arith.constant 0 : index
    %34 = vector.load %arg5[%c0_9, %c0_10] : memref<4x1xf32, #tpu.memory_space<vmem>>, vector<4x1xf32>
    %35 = arith.mulf %33, %27 : vector<4x8xf32>
    %cst_11 = arith.constant dense<0.000000e+00> : vector<4xf32>
    %36 = vector.multi_reduction <add>, %35, %cst_11 [1] : vector<4x8xf32> to vector<4xf32>
    %37 = vector.shape_cast %36 : vector<4xf32> to vector<4x1xf32>
    %38 = arith.addf %34, %37 : vector<4x1xf32>
    %c0_12 = arith.constant 0 : index
    %c0_13 = arith.constant 0 : index
    %39 = vector.load %arg5[%c0_12, %c0_13] : memref<4x1xf32, #tpu.memory_space<vmem>>, vector<4x1xf32>
    tpu.vector_store %arg5[%c0_12, %c0_13], %38 {strides = array<i32>} : memref<4x1xf32, #tpu.memory_space<vmem>>, vector<4x1xf32>,
    %c0_14 = arith.constant 0 : index
    %c0_15 = arith.constant 0 : index
    %40 = vector.load %arg6[%c0_14, %c0_15] : memref<4x1xf32, #tpu.memory_space<vmem>>, vector<4x1xf32>
    %cst_16 = arith.constant dense<0.000000e+00> : vector<4xf32>
    %41 = vector.multi_reduction <add>, %27, %cst_16 [1] : vector<4x8xf32> to vector<4xf32>
    %42 = vector.shape_cast %41 : vector<4xf32> to vector<4x1xf32>
    %43 = arith.addf %40, %42 : vector<4x1xf32>
    %c0_17 = arith.constant 0 : index
    %c0_18 = arith.constant 0 : index
    %44 = vector.load %arg6[%c0_17, %c0_18] : memref<4x1xf32, #tpu.memory_space<vmem>>, vector<4x1xf32>
    tpu.vector_store %arg6[%c0_17, %c0_18], %43 {strides = array<i32>} : memref<4x1xf32, #tpu.memory_space<vmem>>, vector<4x1xf32>,
    %c0_i32_19 = arith.constant 0 : i32
    %45 = arith.cmpi eq, %arg1, %c0_i32_19 : i32
    %46 = arith.extui %45 : i1 to i32
    %c0_i32_20 = arith.constant 0 : i32
    %47 = arith.cmpi ne, %46, %c0_i32_20 : i32
    scf.if %47 {
      %c0_21 = arith.constant 0 : index
      %c0_22 = arith.constant 0 : index
      %48 = vector.load %arg5[%c0_21, %c0_22] : memref<4x1xf32, #tpu.memory_space<vmem>>, vector<4x1xf32>
      %49 = vector.shape_cast %48 : vector<4x1xf32> to vector<4x1xf32>
      %50 = vector.broadcast %49 : vector<4x1xf32> to vector<4x128xf32>
      %c0_23 = arith.constant 0 : index
      %c0_24 = arith.constant 0 : index
      %c0_25 = arith.constant 0 : index
      %51 = vector.load %arg4[%c0_23, %c0_24, %c0_25] : memref<1x8x128xf32, #tpu.memory_space<vmem>>, vector<1x4x128xf32>
      %52 = vector.shape_cast %51 : vector<1x4x128xf32> to vector<4x128xf32>
      %53 = vector.shape_cast %50 : vector<4x128xf32> to vector<1x4x128xf32>
      tpu.vector_store %arg4[%c0_23, %c0_24, %c0_25], %53 {strides = array<i32>} : memref<1x8x128xf32, #tpu.memory_space<vmem>>, vector<1x4x128xf32>,
      %c0_26 = arith.constant 0 : index
      %c0_27 = arith.constant 0 : index
      %54 = vector.load %arg6[%c0_26, %c0_27] : memref<4x1xf32, #tpu.memory_space<vmem>>, vector<4x1xf32>
      %55 = vector.shape_cast %54 : vector<4x1xf32> to vector<4x1xf32>
      %56 = vector.broadcast %55 : vector<4x1xf32> to vector<4x128xf32>
      %c0_28 = arith.constant 0 : index
      %c4 = arith.constant 4 : index
      %c0_29 = arith.constant 0 : index
      %57 = vector.load %arg4[%c0_28, %c4, %c0_29] : memref<1x8x128xf32, #tpu.memory_space<vmem>>, vector<1x4x128xf32>
      %58 = vector.shape_cast %57 : vector<1x4x128xf32> to vector<4x128xf32>
      %59 = vector.shape_cast %56 : vector<4x128xf32> to vector<1x4x128xf32>
      tpu.vector_store %arg4[%c0_28, %c4, %c0_29], %59 {strides = array<i32>} : memref<1x8x128xf32, #tpu.memory_space<vmem>>, vector<1x4x128xf32>,
    } else {
    }
    return
  }
  func.func @transform_0(%arg0: i32, %arg1: i32) -> (i32, i32) {
    %c1_i32 = arith.constant 1 : i32
    %0 = arith.muli %arg0, %c1_i32 : i32
    %1 = arith.addi %0, %arg1 : i32
    %c0_i32 = arith.constant 0 : i32
    %2 = arith.minsi %1, %c0_i32 : i32
    %c0_i32_0 = arith.constant 0 : i32
    %c0_i32_1 = arith.constant 0 : i32
    return %c0_i32_0, %2 : i32, i32
  }
  func.func @transform_1(%arg0: i32, %arg1: i32) -> (i32, i32) {
    %c1_i32 = arith.constant 1 : i32
    %0 = arith.muli %arg0, %c1_i32 : i32
    %1 = arith.addi %0, %arg1 : i32
    %c0_i32 = arith.constant 0 : i32
    %2 = arith.minsi %1, %c0_i32 : i32
    %c0_i32_0 = arith.constant 0 : i32
    %c0_i32_1 = arith.constant 0 : i32
    return %c0_i32_0, %2 : i32, i32
  }
  func.func @transform_2(%arg0: i32, %arg1: i32) -> (i32, i32, i32) {
    %c0_i32 = arith.constant 0 : i32
    %c0_i32_0 = arith.constant 0 : i32
    %c0_i32_1 = arith.constant 0 : i32
    return %arg0, %c0_i32, %c0_i32_0 : i32, i32, i32
  }
}

</mosaic_0001>

<llo_original>
// kernel: tpu_custom_call.1
$region0: #{tpu_custom_call.1}
  #allocation0 [shape = 'u32[]', space=smem, size = 0x4, offset = 0x4, fixed_abs, tag = 'smem constant byte address 0x4 - core index']
  #allocation1 [shape = 'u32[144,128]{1,0:T(1,128)}', space=vmem, size = 0x12000, scoped, tag = 'internal scratch']
  #allocation2 [shape = 'f32[4,1]{1,0:T(4,128)}', space=vmem, size = 0x800, scoped, tag = 'scratch operand']
  #allocation3 [shape = 'f32[4,1]{1,0:T(4,128)}', space=vmem, size = 0x800, scoped, tag = 'scratch operand']
  #allocation4 [shape = 'f32[4,8]{1,0:T(4,128)}', space=vmem, size = 0x800, scoped, tag = 'scratch operand']
  %s0 = inlined_call_operand.hbm [shape: f32[4,8], index: 0, kind: input, shape index: {}]
  %s1 = inlined_call_operand.vmem [shape: s32[1,8], index: 1, kind: input, shape index: {}]
  %s2 = inlined_call_operand.hbm [shape: f32[1,8,128], index: 2, kind: output, shape index: {}]
  %s3 = sld [smem:[#allocation0]]
  $region30: #{tpu_custom_call.1} parent=0
    _
  %s5 = ssub.s32 1, %s3
  %s6 = scalar_select 0, %s5, %s3
  $region1: #{tpu_custom_call.1} parent=0
    #allocation5 [shape = 'u8[2048]{0}', space=vmem, size = 0x800, scoped, tag = 'input window, operand 0, single buffered']
    #allocation6 [shape = 's32[1]{0}', space=sflag, size = 0x4, scoped, tag = 'scoped memory for tpu_custom_call.1']
    #allocation7 [shape = 's32[1]{0}', space=sflag, size = 0x4, scoped, tag = 'scoped memory for tpu_custom_call.1']
    #allocation8 [shape = 'u8[4096]{0}', space=vmem, size = 0x1000, scoped, tag = 'output window, operand 0, single buffered']
    %7 = vsyncpa [#allocation6], 0
    %8 = vsyncpa [#allocation7], 0
    // Predicated region
    $region2: #{tpu_custom_call.1} parent=1 // pred_check
      _
    $region3: #{tpu_custom_call.1} parent=1 // pred_check_branch
      %10 = sbr.rel (0) target = $region5
    $region4: #{tpu_custom_call.1} parent=1 // pred_region
      %s11 = sadd.s32 0, 0
      %p12 = scmp.lt.s32.totalorder %s11, 0
      %s13 = scalar_select %p12, %s11, 0
      %s15 = ssub.s32 64, 64
      %16 = vsyncadd [#allocation6], %s15
      %s17 = smul.addr %s13, 64
      %s18 = scalar_lea.hbm %s0, %s17
      %s20 = sshll.u32 [#allocation5], 4
      %s21 = int_to_ptr.vmem [resolvable:$true] %s20
      %23 = dma.hbm_to_vmem [thread:$0]  %s18, 64, %s21, [#allocation6]
    $region5: #{tpu_custom_call.1} parent=1 // pred_fallthru
      _
    // Predicated region
    $region6: #{tpu_custom_call.1} parent=1 // pred_check
      _
    $region7: #{tpu_custom_call.1} parent=1 // pred_check_branch
      %25 = sbr.rel (0) target = $region9
    $region8: #{tpu_custom_call.1} parent=1 // pred_region
      %s26 = sadd.s32 0, 0
      %p27 = scmp.lt.s32.totalorder %s26, 0
      %s28 = scalar_select %p27, %s26, 0
      %p29 = scmp.lt.s32.totalorder %s28, 0
      %s30 = scalar_select %p29, %s28, 0
      %s31 = scalar_lea.vmem %s1, %s30
      %s32 = sadd.s32 0, 0
      %p33 = scmp.lt.s32.totalorder %s32, 0
      %s34 = scalar_select %p33, %s32, 0
    $region9: #{tpu_custom_call.1} parent=1 // pred_fallthru
      _
    // Predicated region
    $region10: #{tpu_custom_call.1} parent=1 // pred_check
      _
    $region11: #{tpu_custom_call.1} parent=1 // pred_check_branch
      %36 = sbr.rel (0) target = $region13
    $region12: #{tpu_custom_call.1} parent=1 // pred_region
      %37 = dma.done [#allocation6], 64
    $region13: #{tpu_custom_call.1} parent=1 // pred_fallthru
      _
    %s38 = sadd.s32 0, 0
    %p39 = scmp.lt.s32.totalorder %s38, 0
    %s40 = scalar_select %p39, %s38, 0
    %p41 = scmp.lt.s32.totalorder %s40, 0
    %s42 = scalar_select %p41, %s40, 0
    %s43 = scalar_lea.vmem %s1, %s42
    %s44 = sadd.s32 0, 0
    %p45 = scmp.lt.s32.totalorder %s44, 0
    %s46 = scalar_select %p45, %s44, 0
    %s47 = sadd.s32 0, 0
    %p48 = scmp.lt.s32.totalorder %s47, 0
    %s49 = scalar_select %p48, %s47, 0
    %p50 = scmp.lt.s32.totalorder %s49, 0
    %s51 = scalar_select %p50, %s49, 0
    %s52 = scalar_lea.vmem %s1, %s51
    %s53 = sadd.s32 0, 0
    %p54 = scmp.lt.s32.totalorder %s53, 0
    %s55 = scalar_select %p54, %s53, 0
    %p56 = scmp.eq.s32.totalorder 0, 0
    // Predicated region
    $region14: #{tpu_custom_call.1} parent=1 // pred_check
      %p57 = pneg %p56
    $region15: #{tpu_custom_call.1} parent=1 // pred_check_branch
      %59 = sbr.rel (%p57) target = $region17
    $region16: #{tpu_custom_call.1} parent=1 // pred_region
      %vm60 = vcmask 3072
      %61 = vst.msk [vmem:[#allocation2] sm:$0xf] %vm60, 0.0
      %62 = vst.msk [vmem:[#allocation3] sm:$0xf] %vm60, 0.0
      %v63 = vlaneseq
      %v64 = vshrl.u32 %v63, 7
      %v65 = vcvt.s32.f32 %v64
      %vm66 = vcmask 60416
      %67 = vst.msk [vmem:[#allocation4] sm:$0xf] %vm66, %v65
    $region17: #{tpu_custom_call.1} parent=1 // pred_fallthru
      _
    %s68 = sadd.s32 0, 0
    %s69 = smul.u32 %s68, 8
    %v70 = vlaneseq
    %v71 = vand.u32 %v70, 127
    %v72 = vstv %s69
    %v73 = vadd.s32 %v72, %v71
    %vm74 = vcmp.lt.s32.totalorder %v73, 8
    %v75 = vsel %vm74, 1, 0
    %v76 = vcvt.s32.f32 %v75
    %v77 = vld [vmem:[#allocation5] sm:$0xf]
    %vm78 = vcmp.eq.s32.totalorder %v75, 1
    %v79 = vsel %vm78, %v77, 0.0
    %vm80 = vcmask 60416
    %v81 = vsel %vm80, %v79, -inf
    %v82 = vrot.slane %v81, 4
    %v83 = vmax.f32 %v81, %v82
    %v84 = vrot.slane %v83, 2
    %v85 = vmax.f32 %v83, %v84
    %v86 = vrot.slane %v85, 1
    %v87 = vmax.f32 %v85, %v86
    %v88 = vsub.f32 %v79, %v87
    %v89 = vmul.f32 %v88, 1.442695
    %v90 = vpow.pop %v89
    %v91 = vsel %vm80, %v90, 0.0
    %v92 = vrot.slane %v91, 4
    %v93 = vadd.f32 %v91, %v92
    %v94 = vrot.slane %v93, 2
    %v95 = vadd.f32 %v93, %v94
    %v96 = vrot.slane %v95, 1
    %v97 = vadd.f32 %v95, %v96
    %v98 = vrcp.pop %v97
    %v99 = vmul.f32 %v76, %v98
    %v100 = vmul.f32 %v90, %v99
    %v101 = vld [vmem:[%s52] sm:$0x1]
    %v102 = vcvt.s32.f32 %v101
    %v103 = vld [vmem:[#allocation4] sm:$0xf]
    %v105 = vlaneseq
    %v106 = vshrl.u32 %v105, 7
    %v107 = vsub.s32 0, %v106
    %v108 = vrot.slane %v102, %v107
    %v110 = vsub.f32 %v108, %v103
    %v111 = vmul.f32 %v110, %v110
    %v112 = vld [vmem:[#allocation2] sm:$0xf]
    %v113 = vmul.f32 %v111, %v100
    %v114 = vsel %vm80, %v113, 0.0
    %115 = vadd.xlane.f32.xlu0 %v114
    %v116 = vpop.xlane.xlu0 %115
    %v117 = vadd.f32 %v112, %v116
    %vm118 = vcmask 3072
    %119 = vst.msk [vmem:[#allocation2] sm:$0xf] %vm118, %v117
    %v120 = vld [vmem:[#allocation3] sm:$0xf]
    %v121 = vsel %vm80, %v100, 0.0
    %122 = vadd.xlane.f32.xlu0 %v121
    %v123 = vpop.xlane.xlu0 %122
    %v124 = vadd.f32 %v120, %v123
    %125 = vst.msk [vmem:[#allocation3] sm:$0xf] %vm118, %v124
    // Predicated region
    $region18: #{tpu_custom_call.1} parent=1 // pred_check
      %p126 = pneg %p56
    $region19: #{tpu_custom_call.1} parent=1 // pred_check_branch
      %128 = sbr.rel (%p126) target = $region21
    $region20: #{tpu_custom_call.1} parent=1 // pred_region
      %v129 = vld [vmem:[#allocation2] sm:$0xf]
      %131 = vset.pattern.permute.xlu0 0
      %132 = vperm.xlu0 %131, %v129
      %v133 = vpop.permute.xlu0 %132
      %135 = vst [vmem:[#allocation8] sm:$0xf] %v133
      %v136 = vld [vmem:[#allocation3] sm:$0xf]
      %138 = vset.pattern.permute.xlu0 0
      %139 = vperm.xlu0 %138, %v136
      %v140 = vpop.permute.xlu0 %139
      %142 = vst [vmem:[#allocation8 + $0x4] sm:$0xf] %v140
    $region21: #{tpu_custom_call.1} parent=1 // pred_fallthru
      _
    // Predicated region
    $region22: #{tpu_custom_call.1} parent=1 // pred_check
      _
    $region23: #{tpu_custom_call.1} parent=1 // pred_check_branch
      %144 = sbr.rel (0) target = $region25
    $region24: #{tpu_custom_call.1} parent=1 // pred_region
      %s146 = ssub.s32 128, 128
      %147 = vsyncadd [#allocation7], %s146
      %s149 = sshll.u32 [#allocation8], 4
      %s150 = int_to_ptr.vmem [resolvable:$true] %s149
      %152 = dma.vmem_to_hbm [thread:$0]  %s150, 128, %s2, [#allocation7]
    $region25: #{tpu_custom_call.1} parent=1 // pred_fallthru
      _
    // Predicated region
    $region26: #{tpu_custom_call.1} parent=1 // pred_check
      _
    $region27: #{tpu_custom_call.1} parent=1 // pred_check_branch
      %154 = sbr.rel (0) target = $region29
    $region28: #{tpu_custom_call.1} parent=1 // pred_region
      %155 = dma.done [#allocation7], 128
    $region29: #{tpu_custom_call.1} parent=1 // pred_fallthru
      _
    %156 = vsyncpa [#allocation6], 1
    %157 = vsyncpa [#allocation7], 1

</llo_original>
